<compile_context>
chip_gen: v5e
topology: v5e:2x2
jax: 0.10.0
libtpu: 0.0.40
codegen_flags: <defaults>
</compile_context>

<pallas_src>
import functools

import jax
import jax.numpy as jnp
from jax.experimental import pallas as pl
from jax.experimental.pallas import tpu as pltpu

LANE = 128
SUBLANE = 8
TB_MAX = 512


def _round_up(x, m):
    return (x + m - 1) // m * m


def _cdiv(a, b):
    return -(-a // b)


def _actor_kernel(x_ref, w1_ref, w2_ref, w3_ref, w4_ref, w5_ref, b_ref, o_ref,
                  *, max_action, widths):
    """One batch tile of the 5-layer tanh MLP (all feature dims 128-lane padded).

    x_ref    : (TB, IN_PAD)        bf16
    w{i}_ref : (in_i, out_i)       bf16   (in_i/out_i are 128-multiples)
    b_ref    : (5, widths[0])      f32    row i = zero-padded bias of layer i
    o_ref    : (TB, widths[4])     f32
    """
    bf16 = jnp.bfloat16

    def layer(h_bf16, w_ref, row, width):
        # bf16 x bf16 on the MXU with f32 accumulation; bias add + tanh in f32
        # (v5e has no bf16 VPU/EUP).  `width` is a 128-multiple, so the bias slice
        # is lane-tile aligned (no relayout).
        z = jnp.dot(h_bf16, w_ref[...], preferred_element_type=jnp.float32)
        return jnp.tanh(z + b_ref[row:row + 1, :width])

    h = layer(x_ref[...], w1_ref, 0, widths[0])
    h = layer(h.astype(bf16), w2_ref, 1, widths[1])
    h = layer(h.astype(bf16), w3_ref, 2, widths[2])
    h = layer(h.astype(bf16), w4_ref, 3, widths[3])
    h = layer(h.astype(bf16), w5_ref, 4, widths[4])
    # Padded output lanes (and padded batch rows) hold garbage-free zeros / throwaway
    # values; the wrapper slices them off.  Do not read them elsewhere.
    o_ref[...] = (max_action * h).astype(o_ref.dtype)


def pack_actor_params(params):
    """Pad all dims to 128-lane multiples, cast weights to bf16, pack biases."""
    ws = [w for (w, _) in params]
    bs = [b for (_, b) in params]
    state_dim = ws[0].shape[0]
    action_dim = ws[-1].shape[1]

    in_dims = [state_dim] + [w.shape[1] for w in ws[:-1]]
    out_dims = [w.shape[1] for w in ws]
    in_pads = [_round_up(d, LANE) for d in in_dims]
    out_pads = [_round_up(d, LANE) for d in out_dims]

    weights = []
    for w, ip, op in zip(ws, in_pads, out_pads):
        wp = jnp.zeros((ip, op), jnp.float32).at[:w.shape[0], :w.shape[1]].set(w)
        weights.append(wp.astype(jnp.bfloat16))

    slab_w = max(out_pads)
    b_slab = jnp.zeros((5, slab_w), jnp.float32)
    for i, b in enumerate(bs):
        b_slab = b_slab.at[i, :b.shape[1]].set(b[0].astype(jnp.float32))

    meta = dict(in_pad=in_pads[0], widths=tuple(out_pads),
                state_dim=state_dim, action_dim=action_dim)
    return tuple(weights), b_slab, meta


@functools.partial(jax.jit,
                   static_argnames=("max_action", "in_pad", "widths",
                                    "state_dim", "action_dim"))
def actor_forward(x, weights, b_slab, *, max_action, in_pad, widths,
                  state_dim, action_dim):
    """Runs the Actor forward pass inside a single Pallas kernel (tiled over batch)."""
    w1, w2, w3, w4, w5 = weights
    batch = x.shape[0]
    out_pad = widths[4]

    # Batch tiling: keep the grid-step count tiny (per-step overhead dominates),
    # but use 2 equal steps for mid-size batches so v7x's 2 TensorCores both work.
    if batch <= 128:
        tb = _round_up(max(batch, SUBLANE), SUBLANE)
        steps = 1
    elif batch <= 2 * TB_MAX:
        steps = 2
        tb = _round_up(_cdiv(batch, 2), SUBLANE)
    else:
        tb = TB_MAX
        steps = _cdiv(batch, tb)
    batch_padded = steps * tb

    # Pad batch rows and state lanes, cast to bf16 (lane-dense x tile, bf16 MXU path).
    x = jnp.pad(x, ((0, batch_padded - batch), (0, in_pad - state_dim)))
    x = x.astype(jnp.bfloat16)

    kernel = functools.partial(_actor_kernel,
                               max_action=float(max_action), widths=widths)

    def full(a):  # whole-array block, constant index -> fetched once for the grid.
        return pl.BlockSpec(a.shape, lambda i: (0,) * a.ndim)

    out = pl.pallas_call(
        kernel,
        out_shape=jax.ShapeDtypeStruct((batch_padded, out_pad), jnp.float32),
        grid=(steps,),
        in_specs=[
            pl.BlockSpec((tb, in_pad), lambda i: (i, 0)),   # x tile (pipelined)
            full(w1), full(w2), full(w3), full(w4), full(w5),
            full(b_slab),
        ],
        out_specs=pl.BlockSpec((tb, out_pad), lambda i: (i, 0)),
        compiler_params=pltpu.CompilerParams(
            dimension_semantics=("parallel",)),
    )(x, w1, w2, w3, w4, w5, b_slab)

    return out[:batch, :action_dim]


def init_actor_params(key, state_dim, action_dim):
    """Deterministic init mimicking nn.Linear defaults (uniform(+-1/sqrt(fan_in)))."""
    dims = [state_dim, 300, 200, 100, 50, action_dim]
    params = []
    for i in range(5):
        fan_in, fan_out = dims[i], dims[i + 1]
        key, kw, kb = jax.random.split(key, 3)
        bound = 1.0 / jnp.sqrt(fan_in)
        # Stored as (in, out): transpose of PyTorch's (out, in) weight.
        w = jax.random.uniform(kw, (fan_in, fan_out), jnp.float32, -bound, bound)
        b = jax.random.uniform(kb, (1, fan_out), jnp.float32, -bound, bound)
        params.append((w, b))
    return params


def actor_reference_f32(x, params, max_action):
    """Pure f32 pure-JAX reference (matches the PyTorch module)."""
    (w1, b1), (w2, b2), (w3, b3), (w4, b4), (w5, b5) = params
    h = jnp.tanh(x @ w1 + b1)
    h = jnp.tanh(h @ w2 + b2)
    h = jnp.tanh(h @ w3 + b3)
    h = jnp.tanh(h @ w4 + b4)
    return max_action * jnp.tanh(h @ w5 + b5)


def actor_reference_bf16(x, params, max_action):
    """Reference with the same bf16-input / f32-accumulate numerics as the kernel."""
    h = x
    for (w, b) in params:
        z = jnp.dot(h.astype(jnp.bfloat16), w.astype(jnp.bfloat16),
                    preferred_element_type=jnp.float32) + b
        h = jnp.tanh(z)
    return max_action * h


if __name__ == "__main__":
    key = jax.random.PRNGKey(0)
    state_dim = 17      # e.g. HalfCheetah-style observation
    action_dim = 6
    max_action = 2.0
    batch = 2

    key, kx, kp = jax.random.split(key, 3)
    x = jax.random.normal(kx, (batch, state_dim), dtype=jnp.float32)
    params = init_actor_params(kp, state_dim, action_dim)
    weights, b_slab, meta = pack_actor_params(params)

    out = actor_forward(x, weights, b_slab, max_action=max_action, **meta)
    out = jax.block_until_ready(out)
    assert out.shape == (batch, action_dim)

    ref_bf16 = actor_reference_bf16(x, params, max_action)
    ref_f32 = actor_reference_f32(x, params, max_action)
    assert jnp.allclose(out, ref_bf16, atol=1e-2, rtol=1e-2), "mismatch vs bf16 reference"
    assert jnp.allclose(out, ref_f32, atol=1e-1, rtol=5e-2), "mismatch vs f32 reference"

    # Larger batch: exercises the 2-step (even, TC-parallel) grid path + row padding.
    key, kb_ = jax.random.split(key)
    xb = jax.random.normal(kb_, (300, state_dim), dtype=jnp.float32)
    out_big = jax.block_until_ready(
        actor_forward(xb, weights, b_slab, max_action=max_action, **meta))
    assert out_big.shape == (300, action_dim)
    assert jnp.allclose(out_big, actor_reference_bf16(xb, params, max_action),
                        atol=1e-2, rtol=1e-2), "mismatch vs bf16 reference (batch=300)"

    print("KERNEL_OK")
</pallas_src>

<mosaic_0001>
module attributes {stable_mosaic.version = 11 : i64} {
  func.func @_actor_kernel(%arg0: i32, %arg1: memref<8x128xbf16, #tpu.memory_space<vmem>>, %arg2: memref<128x384xbf16, #tpu.memory_space<vmem>>, %arg3: memref<384x256xbf16, #tpu.memory_space<vmem>>, %arg4: memref<256x128xbf16, #tpu.memory_space<vmem>>, %arg5: memref<128x128xbf16, #tpu.memory_space<vmem>>, %arg6: memref<128x128xbf16, #tpu.memory_space<vmem>>, %arg7: memref<5x384xf32, #tpu.memory_space<vmem>>, %arg8: memref<8x128xf32, #tpu.memory_space<vmem>>) attributes {dimension_semantics = [#tpu.dimension_semantics<parallel>], iteration_bounds = array<i64: 1>, scalar_prefetch = 0 : i64, scratch_operands = 0 : i64, tpu.core_type = #tpu.core_type<tc>, window_params = [{transform_indices = @transform_0, window_bounds = array<i64: 8, 128>}, {pipeline_mode = #tpu.pipeline_mode<synchronous>, transform_indices = @transform_1, window_bounds = array<i64: 128, 384>}, {pipeline_mode = #tpu.pipeline_mode<synchronous>, transform_indices = @transform_2, window_bounds = array<i64: 384, 256>}, {pipeline_mode = #tpu.pipeline_mode<synchronous>, transform_indices = @transform_3, window_bounds = array<i64: 256, 128>}, {pipeline_mode = #tpu.pipeline_mode<synchronous>, transform_indices = @transform_4, window_bounds = array<i64: 128, 128>}, {pipeline_mode = #tpu.pipeline_mode<synchronous>, transform_indices = @transform_5, window_bounds = array<i64: 128, 128>}, {pipeline_mode = #tpu.pipeline_mode<synchronous>, transform_indices = @transform_6, window_bounds = array<i64: 5, 384>}, {transform_indices = @transform_7, window_bounds = array<i64: 8, 128>}]} {
    %c0 = arith.constant 0 : index
    %c0_0 = arith.constant 0 : index
    %0 = vector.load %arg1[%c0, %c0_0] : memref<8x128xbf16, #tpu.memory_space<vmem>>, vector<8x128xbf16>
    %c0_1 = arith.constant 0 : index
    %c0_2 = arith.constant 0 : index
    %1 = vector.load %arg2[%c0_1, %c0_2] : memref<128x384xbf16, #tpu.memory_space<vmem>>, vector<128x384xbf16>
    %cst = arith.constant dense<0.000000e+00> : vector<8x384xf32>
    %2 = tpu.matmul %0, %1, %cst {dimension_numbers = #tpu.dot_dimension_numbers<[1], [0], [0], [1], [0, 0, 1, 1], [], []>} : vector<8x128xbf16>, vector<128x384xbf16>, vector<8x384xf32> -> vector<8x384xf32>
    %c0_3 = arith.constant 0 : index
    %c0_4 = arith.constant 0 : index
    %3 = vector.load %arg7[%c0_3, %c0_4] : memref<5x384xf32, #tpu.memory_space<vmem>>, vector<1x384xf32>
    %4 = vector.broadcast %3 : vector<1x384xf32> to vector<8x384xf32>
    %5 = arith.addf %2, %4 : vector<8x384xf32>
    %6 = math.tanh %5 : vector<8x384xf32>
    %7 = arith.truncf %6 : vector<8x384xf32> to vector<8x384xbf16>
    %c0_5 = arith.constant 0 : index
    %c0_6 = arith.constant 0 : index
    %8 = vector.load %arg3[%c0_5, %c0_6] : memref<384x256xbf16, #tpu.memory_space<vmem>>, vector<384x256xbf16>
    %cst_7 = arith.constant dense<0.000000e+00> : vector<8x256xf32>
    %9 = tpu.matmul %7, %8, %cst_7 {dimension_numbers = #tpu.dot_dimension_numbers<[1], [0], [0], [1], [0, 0, 1, 1], [], []>} : vector<8x384xbf16>, vector<384x256xbf16>, vector<8x256xf32> -> vector<8x256xf32>
    %c1 = arith.constant 1 : index
    %c0_8 = arith.constant 0 : index
    %10 = vector.load %arg7[%c1, %c0_8] : memref<5x384xf32, #tpu.memory_space<vmem>>, vector<1x256xf32>
    %11 = vector.broadcast %10 : vector<1x256xf32> to vector<8x256xf32>
    %12 = arith.addf %9, %11 : vector<8x256xf32>
    %13 = math.tanh %12 : vector<8x256xf32>
    %14 = arith.truncf %13 : vector<8x256xf32> to vector<8x256xbf16>
    %c0_9 = arith.constant 0 : index
    %c0_10 = arith.constant 0 : index
    %15 = vector.load %arg4[%c0_9, %c0_10] : memref<256x128xbf16, #tpu.memory_space<vmem>>, vector<256x128xbf16>
    %cst_11 = arith.constant dense<0.000000e+00> : vector<8x128xf32>
    %16 = tpu.matmul %14, %15, %cst_11 {dimension_numbers = #tpu.dot_dimension_numbers<[1], [0], [0], [1], [0, 0, 1, 1], [], []>} : vector<8x256xbf16>, vector<256x128xbf16>, vector<8x128xf32> -> vector<8x128xf32>
    %c2 = arith.constant 2 : index
    %c0_12 = arith.constant 0 : index
    %17 = vector.load %arg7[%c2, %c0_12] : memref<5x384xf32, #tpu.memory_space<vmem>>, vector<1x128xf32>
    %18 = vector.broadcast %17 : vector<1x128xf32> to vector<8x128xf32>
    %19 = arith.addf %16, %18 : vector<8x128xf32>
    %20 = math.tanh %19 : vector<8x128xf32>
    %21 = arith.truncf %20 : vector<8x128xf32> to vector<8x128xbf16>
    %c0_13 = arith.constant 0 : index
    %c0_14 = arith.constant 0 : index
    %22 = vector.load %arg5[%c0_13, %c0_14] : memref<128x128xbf16, #tpu.memory_space<vmem>>, vector<128x128xbf16>
    %cst_15 = arith.constant dense<0.000000e+00> : vector<8x128xf32>
    %23 = tpu.matmul %21, %22, %cst_15 {dimension_numbers = #tpu.dot_dimension_numbers<[1], [0], [0], [1], [0, 0, 1, 1], [], []>} : vector<8x128xbf16>, vector<128x128xbf16>, vector<8x128xf32> -> vector<8x128xf32>
    %c3 = arith.constant 3 : index
    %c0_16 = arith.constant 0 : index
    %24 = vector.load %arg7[%c3, %c0_16] : memref<5x384xf32, #tpu.memory_space<vmem>>, vector<1x128xf32>
    %25 = vector.broadcast %24 : vector<1x128xf32> to vector<8x128xf32>
    %26 = arith.addf %23, %25 : vector<8x128xf32>
    %27 = math.tanh %26 : vector<8x128xf32>
    %28 = arith.truncf %27 : vector<8x128xf32> to vector<8x128xbf16>
    %c0_17 = arith.constant 0 : index
    %c0_18 = arith.constant 0 : index
    %29 = vector.load %arg6[%c0_17, %c0_18] : memref<128x128xbf16, #tpu.memory_space<vmem>>, vector<128x128xbf16>
    %cst_19 = arith.constant dense<0.000000e+00> : vector<8x128xf32>
    %30 = tpu.matmul %28, %29, %cst_19 {dimension_numbers = #tpu.dot_dimension_numbers<[1], [0], [0], [1], [0, 0, 1, 1], [], []>} : vector<8x128xbf16>, vector<128x128xbf16>, vector<8x128xf32> -> vector<8x128xf32>
    %c4 = arith.constant 4 : index
    %c0_20 = arith.constant 0 : index
    %31 = vector.load %arg7[%c4, %c0_20] : memref<5x384xf32, #tpu.memory_space<vmem>>, vector<1x128xf32>
    %32 = vector.broadcast %31 : vector<1x128xf32> to vector<8x128xf32>
    %33 = arith.addf %30, %32 : vector<8x128xf32>
    %34 = math.tanh %33 : vector<8x128xf32>
    %cst_21 = arith.constant 2.000000e+00 : f32
    %35 = vector.broadcast %cst_21 : f32 to vector<8x128xf32>
    %36 = arith.mulf %35, %34 : vector<8x128xf32>
    %c0_22 = arith.constant 0 : index
    %c0_23 = arith.constant 0 : index
    %37 = vector.load %arg8[%c0_22, %c0_23] : memref<8x128xf32, #tpu.memory_space<vmem>>, vector<8x128xf32>
    tpu.vector_store %arg8[%c0_22, %c0_23], %36 {strides = array<i32>} : memref<8x128xf32, #tpu.memory_space<vmem>>, vector<8x128xf32>,
    return
  }
  func.func @transform_0(%arg0: i32) -> (i32, i32) {
    %c0_i32 = arith.constant 0 : i32
    %c0_i32_0 = arith.constant 0 : i32
    return %arg0, %c0_i32 : i32, i32
  }
  func.func @transform_1(%arg0: i32) -> (i32, i32) {
    %c0_i32 = arith.constant 0 : i32
    %c0_i32_0 = arith.constant 0 : i32
    %c0_i32_1 = arith.constant 0 : i32
    return %c0_i32, %c0_i32_0 : i32, i32
  }
  func.func @transform_2(%arg0: i32) -> (i32, i32) {
    %c0_i32 = arith.constant 0 : i32
    %c0_i32_0 = arith.constant 0 : i32
    %c0_i32_1 = arith.constant 0 : i32
    return %c0_i32, %c0_i32_0 : i32, i32
  }
  func.func @transform_3(%arg0: i32) -> (i32, i32) {
    %c0_i32 = arith.constant 0 : i32
    %c0_i32_0 = arith.constant 0 : i32
    %c0_i32_1 = arith.constant 0 : i32
    return %c0_i32, %c0_i32_0 : i32, i32
  }
  func.func @transform_4(%arg0: i32) -> (i32, i32) {
    %c0_i32 = arith.constant 0 : i32
    %c0_i32_0 = arith.constant 0 : i32
    %c0_i32_1 = arith.constant 0 : i32
    return %c0_i32, %c0_i32_0 : i32, i32
  }
  func.func @transform_5(%arg0: i32) -> (i32, i32) {
    %c0_i32 = arith.constant 0 : i32
    %c0_i32_0 = arith.constant 0 : i32
    %c0_i32_1 = arith.constant 0 : i32
    return %c0_i32, %c0_i32_0 : i32, i32
  }
  func.func @transform_6(%arg0: i32) -> (i32, i32) {
    %c0_i32 = arith.constant 0 : i32
    %c0_i32_0 = arith.constant 0 : i32
    %c0_i32_1 = arith.constant 0 : i32
    return %c0_i32, %c0_i32_0 : i32, i32
  }
  func.func @transform_7(%arg0: i32) -> (i32, i32) {
    %c0_i32 = arith.constant 0 : i32
    %c0_i32_0 = arith.constant 0 : i32
    return %arg0, %c0_i32 : i32, i32
  }
}

</mosaic_0001>

<llo_original>
// kernel: actor_forward.1
$region0: #{actor_forward.1}
  #allocation0 [shape = 'u32[]', space=smem, size = 0x4, offset = 0x4, fixed_abs, tag = 'smem constant byte address 0x4 - core index']
  #allocation1 [shape = 'u32[72,128]{1,0:T(1,128)}', space=vmem, size = 0x9000, scoped, tag = 'internal scratch']
  %s0 = inlined_call_operand.vmem [shape: bf16[8,128], index: 0, kind: input, shape index: {}]
  %s1 = inlined_call_operand.hbm [shape: bf16[128,384], index: 1, kind: input, shape index: {}]
  %s2 = inlined_call_operand.hbm [shape: bf16[384,256], index: 2, kind: input, shape index: {}]
  %s3 = inlined_call_operand.hbm [shape: bf16[256,128], index: 3, kind: input, shape index: {}]
  %s4 = inlined_call_operand.hbm [shape: bf16[128,128], index: 4, kind: input, shape index: {}]
  %s5 = inlined_call_operand.hbm [shape: bf16[128,128], index: 5, kind: input, shape index: {}]
  %s6 = inlined_call_operand.hbm [shape: f32[5,384], index: 6, kind: input, shape index: {}]
  %s7 = inlined_call_operand.vmem [shape: f32[8,128], index: 7, kind: output, shape index: {}]
  %s8 = sld [smem:[#allocation0]]
  $region62: #{actor_forward.1} parent=0
    _
  %s10 = ssub.s32 1, %s8
  %s11 = scalar_select 0, %s10, %s8
  $region1: #{actor_forward.1} parent=0
    #allocation2 [shape = 'u8[98304]{0}', space=vmem, size = 0x18000, scoped, tag = 'input window, operand 1, single buffered']
    #allocation3 [shape = 's32[1]{0}', space=sflag, size = 0x4, scoped, tag = 'scoped memory for actor_forward.1']
    #allocation4 [shape = 'u8[196608]{0}', space=vmem, size = 0x30000, scoped, tag = 'input window, operand 2, single buffered']
    #allocation5 [shape = 's32[1]{0}', space=sflag, size = 0x4, scoped, tag = 'scoped memory for actor_forward.1']
    #allocation6 [shape = 'u8[65536]{0}', space=vmem, size = 0x10000, scoped, tag = 'input window, operand 3, single buffered']
    #allocation7 [shape = 'u8[32768]{0}', space=vmem, size = 0x8000, scoped, tag = 'input window, operand 4, single buffered']
    #allocation8 [shape = 's32[1]{0}', space=sflag, size = 0x4, scoped, tag = 'scoped memory for actor_forward.1']
    #allocation9 [shape = 'u8[32768]{0}', space=vmem, size = 0x8000, scoped, tag = 'input window, operand 5, single buffered']
    #allocation10 [shape = 'u8[12288]{0}', space=vmem, size = 0x3000, scoped, tag = 'input window, operand 6, single buffered']
    #allocation11 [shape = 's32[1]{0}', space=sflag, size = 0x4, scoped, tag = 'scoped memory for actor_forward.1']
    %12 = vsyncpa [#allocation3], 0
    %13 = vsyncpa [#allocation5], 0
    %14 = vsyncpa [#allocation8], 0
    %15 = vsyncpa [#allocation11], 0
    // Predicated region
    $region2: #{actor_forward.1} parent=1 // pred_check
      _
    $region3: #{actor_forward.1} parent=1 // pred_check_branch
      %17 = sbr.rel (0) target = $region5
    $region4: #{actor_forward.1} parent=1 // pred_region
      _
    $region5: #{actor_forward.1} parent=1 // pred_fallthru
      _
    // Predicated region
    $region6: #{actor_forward.1} parent=1 // pred_check
      _
    $region7: #{actor_forward.1} parent=1 // pred_check_branch
      %19 = sbr.rel (0) target = $region9
    $region8: #{actor_forward.1} parent=1 // pred_region
      %21 = vsyncadd [#allocation3], 0
      %s22 = sshll.u32 %s1, 4
      %s23 = int_to_ptr.hbm [resolvable:$true] %s22
      %s24 = sshll.u32 [#allocation2], 4
      %s25 = int_to_ptr.vmem [resolvable:$true] %s24
      %30 = dma.hbm_to_vmem [thread:$0]  %s23, 3072, %s25, [#allocation3], 192, 192, 12
    $region9: #{actor_forward.1} parent=1 // pred_fallthru
      _
    // Predicated region
    $region10: #{actor_forward.1} parent=1 // pred_check
      _
    $region11: #{actor_forward.1} parent=1 // pred_check_branch
      %32 = sbr.rel (0) target = $region13
    $region12: #{actor_forward.1} parent=1 // pred_region
      %34 = vsyncadd [#allocation5], 0
      %s35 = sshll.u32 %s2, 4
      %s36 = int_to_ptr.hbm [resolvable:$true] %s35
      %s37 = sshll.u32 [#allocation4], 4
      %s38 = int_to_ptr.vmem [resolvable:$true] %s37
      %43 = dma.hbm_to_vmem [thread:$0]  %s36, 6144, %s38, [#allocation5], 128, 128, 8
    $region13: #{actor_forward.1} parent=1 // pred_fallthru
      _
    // Predicated region
    $region14: #{actor_forward.1} parent=1 // pred_check
      _
    $region15: #{actor_forward.1} parent=1 // pred_check_branch
      %45 = sbr.rel (0) target = $region17
    $region16: #{actor_forward.1} parent=1 // pred_region
      %47 = vsyncadd [#allocation5], 0
      %s48 = sshll.u32 %s3, 4
      %s49 = int_to_ptr.hbm [resolvable:$true] %s48
      %s50 = sshll.u32 [#allocation6], 4
      %s51 = int_to_ptr.vmem [resolvable:$true] %s50
      %56 = dma.hbm_to_vmem [thread:$0]  %s49, 2048, %s51, [#allocation5], 64, 64, 4
    $region17: #{actor_forward.1} parent=1 // pred_fallthru
      _
    // Predicated region
    $region18: #{actor_forward.1} parent=1 // pred_check
      _
    $region19: #{actor_forward.1} parent=1 // pred_check_branch
      %58 = sbr.rel (0) target = $region21
    $region20: #{actor_forward.1} parent=1 // pred_region
      %60 = vsyncadd [#allocation8], 0
      %s61 = sshll.u32 %s4, 4
      %s62 = int_to_ptr.hbm [resolvable:$true] %s61
      %s63 = sshll.u32 [#allocation7], 4
      %s64 = int_to_ptr.vmem [resolvable:$true] %s63
      %69 = dma.hbm_to_vmem [thread:$0]  %s62, 1024, %s64, [#allocation8], 64, 64, 4
    $region21: #{actor_forward.1} parent=1 // pred_fallthru
      _
    // Predicated region
    $region22: #{actor_forward.1} parent=1 // pred_check
      _
    $region23: #{actor_forward.1} parent=1 // pred_check_branch
      %71 = sbr.rel (0) target = $region25
    $region24: #{actor_forward.1} parent=1 // pred_region
      %73 = vsyncadd [#allocation8], 0
      %s74 = sshll.u32 %s5, 4
      %s75 = int_to_ptr.hbm [resolvable:$true] %s74
      %s76 = sshll.u32 [#allocation9], 4
      %s77 = int_to_ptr.vmem [resolvable:$true] %s76
      %82 = dma.hbm_to_vmem [thread:$0]  %s75, 1024, %s77, [#allocation8], 64, 64, 4
    $region25: #{actor_forward.1} parent=1 // pred_fallthru
      _
    // Predicated region
    $region26: #{actor_forward.1} parent=1 // pred_check
      _
    $region27: #{actor_forward.1} parent=1 // pred_check_branch
      %84 = sbr.rel (0) target = $region29
    $region28: #{actor_forward.1} parent=1 // pred_region
      %86 = vsyncadd [#allocation11], 0
      %s88 = sshll.u32 %s6, 4
      %s89 = int_to_ptr.hbm [resolvable:$true] %s88
      %s90 = sshll.u32 [#allocation10], 4
      %s91 = int_to_ptr.vmem [resolvable:$true] %s90
      %93 = dma.hbm_to_vmem [thread:$0]  %s89, 384, %s91, [#allocation11]
    $region29: #{actor_forward.1} parent=1 // pred_fallthru
      _
    // Predicated region
    $region30: #{actor_forward.1} parent=1 // pred_check
      _
    $region31: #{actor_forward.1} parent=1 // pred_check_branch
      %95 = sbr.rel (0) target = $region33
    $region32: #{actor_forward.1} parent=1 // pred_region
      %97 = dma.done [#allocation3], 3072
    $region33: #{actor_forward.1} parent=1 // pred_fallthru
      _
    // Predicated region
    $region34: #{actor_forward.1} parent=1 // pred_check
      _
    $region35: #{actor_forward.1} parent=1 // pred_check_branch
      %99 = sbr.rel (0) target = $region37
    $region36: #{actor_forward.1} parent=1 // pred_region
      %101 = dma.done [#allocation5], 6144
    $region37: #{actor_forward.1} parent=1 // pred_fallthru
      _
    // Predicated region
    $region38: #{actor_forward.1} parent=1 // pred_check
      _
    $region39: #{actor_forward.1} parent=1 // pred_check_branch
      %103 = sbr.rel (0) target = $region41
    $region40: #{actor_forward.1} parent=1 // pred_region
      %105 = dma.done [#allocation5], 2048
    $region41: #{actor_forward.1} parent=1 // pred_fallthru
      _
    // Predicated region
    $region42: #{actor_forward.1} parent=1 // pred_check
      _
    $region43: #{actor_forward.1} parent=1 // pred_check_branch
      %107 = sbr.rel (0) target = $region45
    $region44: #{actor_forward.1} parent=1 // pred_region
      %109 = dma.done [#allocation8], 1024
    $region45: #{actor_forward.1} parent=1 // pred_fallthru
      _
    // Predicated region
    $region46: #{actor_forward.1} parent=1 // pred_check
      _
    $region47: #{actor_forward.1} parent=1 // pred_check_branch
      %111 = sbr.rel (0) target = $region49
    $region48: #{actor_forward.1} parent=1 // pred_region
      %113 = dma.done [#allocation8], 1024
    $region49: #{actor_forward.1} parent=1 // pred_fallthru
      _
    // Predicated region
    $region50: #{actor_forward.1} parent=1 // pred_check
      _
    $region51: #{actor_forward.1} parent=1 // pred_check_branch
      %115 = sbr.rel (0) target = $region53
    $region52: #{actor_forward.1} parent=1 // pred_region
      %117 = dma.done [#allocation11], 384
    $region53: #{actor_forward.1} parent=1 // pred_fallthru
      _
    %v118 = vld [vmem:[%s0] sm:$0xf]
    %v119 = vld [vmem:[#allocation2] sm:$0xff]
    %v120 = vld [vmem:[#allocation2 + $0x8] sm:$0xf]
    %v121 = vld [vmem:[#allocation2 + $0xc] sm:$0xff]
    %v122 = vld [vmem:[#allocation2 + $0x14] sm:$0xf]
    %v123 = vld [vmem:[#allocation2 + $0x18] sm:$0xff]
    %v124 = vld [vmem:[#allocation2 + $0x20] sm:$0xf]
    %v125 = vld [vmem:[#allocation2 + $0x24] sm:$0xff]
    %v126 = vld [vmem:[#allocation2 + $0x2c] sm:$0xf]
    %v127 = vld [vmem:[#allocation2 + $0x30] sm:$0xff]
    %v128 = vld [vmem:[#allocation2 + $0x38] sm:$0xf]
    %v129 = vld [vmem:[#allocation2 + $0x3c] sm:$0xff]
    %v130 = vld [vmem:[#allocation2 + $0x44] sm:$0xf]
    %v131 = vld [vmem:[#allocation2 + $0x48] sm:$0xff]
    %v132 = vld [vmem:[#allocation2 + $0x50] sm:$0xf]
    %v133 = vld [vmem:[#allocation2 + $0x54] sm:$0xff]
    %v134 = vld [vmem:[#allocation2 + $0x5c] sm:$0xf]
    %v135 = vld [vmem:[#allocation2 + $0x60] sm:$0xff]
    %v136 = vld [vmem:[#allocation2 + $0x68] sm:$0xf]
    %v137 = vld [vmem:[#allocation2 + $0x6c] sm:$0xff]
    %v138 = vld [vmem:[#allocation2 + $0x74] sm:$0xf]
    %v139 = vld [vmem:[#allocation2 + $0x78] sm:$0xff]
    %v140 = vld [vmem:[#allocation2 + $0x80] sm:$0xf]
    %v141 = vld [vmem:[#allocation2 + $0x84] sm:$0xff]
    %v142 = vld [vmem:[#allocation2 + $0x8c] sm:$0xf]
    %v143 = vld [vmem:[#allocation2 + $0x90] sm:$0xff]
    %v144 = vld [vmem:[#allocation2 + $0x98] sm:$0xf]
    %v145 = vld [vmem:[#allocation2 + $0x9c] sm:$0xff]
    %v146 = vld [vmem:[#allocation2 + $0xa4] sm:$0xf]
    %v147 = vld [vmem:[#allocation2 + $0xa8] sm:$0xff]
    %v148 = vld [vmem:[#allocation2 + $0xb0] sm:$0xf]
    %v149 = vld [vmem:[#allocation2 + $0xb4] sm:$0xff]
    %v150 = vld [vmem:[#allocation2 + $0xbc] sm:$0xf]
    %v151 = vld [vmem:[#allocation10] ss:$8 sm:$0x7]
    %v153 = vperm.slane %v151, 0
    %v154 = vperm.slane %v151, 1
    %v155 = vperm.slane %v151, 2
    %v191 = vunpack.c.l.b16 %v119
    %v192 = vunpack.c.h.b16 %v119
    %v193 = vunpack.c.l.b16 %v120
    %v194 = vunpack.c.l.b16 %v121
    %v195 = vunpack.c.h.b16 %v121
    %v196 = vunpack.c.l.b16 %v122
    %v197 = vunpack.c.l.b16 %v123
    %v198 = vunpack.c.h.b16 %v123
    %v199 = vunpack.c.l.b16 %v124
    %v200 = vunpack.c.l.b16 %v125
    %v201 = vunpack.c.h.b16 %v125
    %v202 = vunpack.c.l.b16 %v126
    %v203 = vunpack.c.l.b16 %v127
    %v204 = vunpack.c.h.b16 %v127
    %v205 = vunpack.c.l.b16 %v128
    %v206 = vunpack.c.l.b16 %v129
    %v207 = vunpack.c.h.b16 %v129
    %v208 = vunpack.c.l.b16 %v130
    %v209 = vunpack.c.l.b16 %v131
    %v210 = vunpack.c.h.b16 %v131
    %v211 = vunpack.c.l.b16 %v132
    %v212 = vunpack.c.l.b16 %v133
    %v213 = vunpack.c.h.b16 %v133
    %v214 = vunpack.c.l.b16 %v134
    %v215 = vunpack.c.l.b16 %v135
    %v216 = vunpack.c.h.b16 %v135
    %v217 = vunpack.c.l.b16 %v136
    %v218 = vunpack.c.l.b16 %v137
    %v219 = vunpack.c.h.b16 %v137
    %v220 = vunpack.c.l.b16 %v138
    %v221 = vunpack.c.l.b16 %v139
    %v222 = vunpack.c.h.b16 %v139
    %v223 = vunpack.c.l.b16 %v140
    %v224 = vunpack.c.l.b16 %v141
    %v225 = vunpack.c.h.b16 %v141
    %v226 = vunpack.c.l.b16 %v142
    %v227 = vunpack.c.l.b16 %v143
    %v228 = vunpack.c.h.b16 %v143
    %v229 = vunpack.c.l.b16 %v144
    %v230 = vunpack.c.l.b16 %v145
    %v231 = vunpack.c.h.b16 %v145
    %v232 = vunpack.c.l.b16 %v146
    %v233 = vunpack.c.l.b16 %v147
    %v234 = vunpack.c.h.b16 %v147
    %v235 = vunpack.c.l.b16 %v148
    %v236 = vunpack.c.l.b16 %v149
    %v237 = vunpack.c.h.b16 %v149
    %v238 = vunpack.c.l.b16 %v150
    %v239 = vpack.c.b16 %v194, %v191
    %v240 = vpack.c.b16 %v195, %v192
    %v241 = vpack.c.b16 %v196, %v193
    %v242 = vpack.c.b16 %v200, %v197
    %v243 = vpack.c.b16 %v201, %v198
    %v244 = vpack.c.b16 %v202, %v199
    %v245 = vpack.c.b16 %v206, %v203
    %v246 = vpack.c.b16 %v207, %v204
    %v247 = vpack.c.b16 %v208, %v205
    %v248 = vpack.c.b16 %v212, %v209
    %v249 = vpack.c.b16 %v213, %v210
    %v250 = vpack.c.b16 %v214, %v211
    %v251 = vpack.c.b16 %v218, %v215
    %v252 = vpack.c.b16 %v219, %v216
    %v253 = vpack.c.b16 %v220, %v217
    %v254 = vpack.c.b16 %v224, %v221
    %v255 = vpack.c.b16 %v225, %v222
    %v256 = vpack.c.b16 %v226, %v223
    %v257 = vpack.c.b16 %v230, %v227
    %v258 = vpack.c.b16 %v231, %v228
    %v259 = vpack.c.b16 %v232, %v229
    %v260 = vpack.c.b16 %v236, %v233
    %v261 = vpack.c.b16 %v237, %v234
    %v262 = vpack.c.b16 %v238, %v235
    %287 = vmatpush.bf16.msra.mxu0 %v260
    %288 = vmatpush.bf16.msra.mxu0 %v257
    %289 = vmatpush.bf16.msra.mxu0 %v254
    %290 = vmatpush.bf16.msra.mxu0 %v251
    %291 = vmatpush.bf16.msra.mxu0 %v248
    %292 = vmatpush.bf16.msra.mxu0 %v245
    %293 = vmatpush.bf16.msra.mxu0 %v242
    %294 = vmatpush.bf16.msra.mxu0 %v239
    %295 = vmatmul.bf16.gmra.mxu0 %v118
    %v296 = vpop.f32.mrf.mxu0
    %v297 = vadd.f32 %v153, %v296
    %v298 = vpop.f32.mrf.mxu0
    %299 = vdwg.mxu0
    %300 = vmatpush.bf16.msra.mxu0 %v261
    %301 = vmatpush.bf16.msra.mxu0 %v258
    %302 = vmatpush.bf16.msra.mxu0 %v255
    %303 = vmatpush.bf16.msra.mxu0 %v252
    %304 = vmatpush.bf16.msra.mxu0 %v249
    %305 = vmatpush.bf16.msra.mxu0 %v246
    %306 = vmatpush.bf16.msra.mxu0 %v243
    %307 = vmatpush.bf16.msra.mxu0 %v240
    %308 = vmatmul.bf16.gmra.mxu0 %v118
    %v309 = vpop.f32.mrf.mxu0
    %v310 = vadd.f32 %v154, %v309
    %v311 = vpop.f32.mrf.mxu0
    %312 = vdwg.mxu0
    %313 = vmatpush.bf16.msra.mxu0 %v262
    %314 = vmatpush.bf16.msra.mxu0 %v259
    %315 = vmatpush.bf16.msra.mxu0 %v256
    %316 = vmatpush.bf16.msra.mxu0 %v253
    %317 = vmatpush.bf16.msra.mxu0 %v250
    %318 = vmatpush.bf16.msra.mxu0 %v247
    %319 = vmatpush.bf16.msra.mxu0 %v244
    %320 = vmatpush.bf16.msra.mxu0 %v241
    %321 = vmatmul.bf16.gmra.mxu0 %v118
    %v322 = vpop.f32.mrf.mxu0
    %v323 = vadd.f32 %v155, %v322
    %v324 = vpop.f32.mrf.mxu0
    %325 = vdwg.mxu0
    %v326 = vtanh.pop %v297
    %v327 = vtanh.pop %v310
    %v328 = vtanh.pop %v323
    %v329 = vpack.c.bf16 %v326, %v326
    %v330 = vpack.c.bf16 %v327, %v327
    %v331 = vpack.c.bf16 %v328, %v328
    %v332 = vld [vmem:[#allocation4] sm:$0xff]
    %v333 = vld [vmem:[#allocation4 + $0x8] sm:$0xff]
    %v334 = vld [vmem:[#allocation4 + $0x10] sm:$0xff]
    %v335 = vld [vmem:[#allocation4 + $0x18] sm:$0xff]
    %v336 = vld [vmem:[#allocation4 + $0x20] sm:$0xff]
    %v337 = vld [vmem:[#allocation4 + $0x28] sm:$0xff]
    %v338 = vld [vmem:[#allocation4 + $0x30] sm:$0xff]
    %v339 = vld [vmem:[#allocation4 + $0x38] sm:$0xff]
    %v340 = vld [vmem:[#allocation4 + $0x40] sm:$0xff]
    %v341 = vld [vmem:[#allocation4 + $0x48] sm:$0xff]
    %v342 = vld [vmem:[#allocation4 + $0x50] sm:$0xff]
    %v343 = vld [vmem:[#allocation4 + $0x58] sm:$0xff]
    %v344 = vld [vmem:[#allocation4 + $0x60] sm:$0xff]
    %v345 = vld [vmem:[#allocation4 + $0x68] sm:$0xff]
    %v346 = vld [vmem:[#allocation4 + $0x70] sm:$0xff]
    %v347 = vld [vmem:[#allocation4 + $0x78] sm:$0xff]
    %v348 = vld [vmem:[#allocation4 + $0x80] sm:$0xff]
    %v349 = vld [vmem:[#allocation4 + $0x88] sm:$0xff]
    %v350 = vld [vmem:[#allocation4 + $0x90] sm:$0xff]
    %v351 = vld [vmem:[#allocation4 + $0x98] sm:$0xff]
    %v352 = vld [vmem:[#allocation4 + $0xa0] sm:$0xff]
    %v353 = vld [vmem:[#allocation4 + $0xa8] sm:$0xff]
    %v354 = vld [vmem:[#allocation4 + $0xb0] sm:$0xff]
    %v355 = vld [vmem:[#allocation4 + $0xb8] sm:$0xff]
    %v356 = vld [vmem:[#allocation4 + $0xc0] sm:$0xff]
    %v357 = vld [vmem:[#allocation4 + $0xc8] sm:$0xff]
    %v358 = vld [vmem:[#allocation4 + $0xd0] sm:$0xff]
    %v359 = vld [vmem:[#allocation4 + $0xd8] sm:$0xff]
    %v360 = vld [vmem:[#allocation4 + $0xe0] sm:$0xff]
    %v361 = vld [vmem:[#allocation4 + $0xe8] sm:$0xff]
    %v362 = vld [vmem:[#allocation4 + $0xf0] sm:$0xff]
    %v363 = vld [vmem:[#allocation4 + $0xf8] sm:$0xff]
    %v364 = vld [vmem:[#allocation4 + $0x100] sm:$0xff]
    %v365 = vld [vmem:[#allocation4 + $0x108] sm:$0xff]
    %v366 = vld [vmem:[#allocation4 + $0x110] sm:$0xff]
    %v367 = vld [vmem:[#allocation4 + $0x118] sm:$0xff]
    %v368 = vld [vmem:[#allocation4 + $0x120] sm:$0xff]
    %v369 = vld [vmem:[#allocation4 + $0x128] sm:$0xff]
    %v370 = vld [vmem:[#allocation4 + $0x130] sm:$0xff]
    %v371 = vld [vmem:[#allocation4 + $0x138] sm:$0xff]
    %v372 = vld [vmem:[#allocation4 + $0x140] sm:$0xff]
    %v373 = vld [vmem:[#allocation4 + $0x148] sm:$0xff]
    %v374 = vld [vmem:[#allocation4 + $0x150] sm:$0xff]
    %v375 = vld [vmem:[#allocation4 + $0x158] sm:$0xff]
    %v376 = vld [vmem:[#allocation4 + $0x160] sm:$0xff]
    %v377 = vld [vmem:[#allocation4 + $0x168] sm:$0xff]
    %v378 = vld [vmem:[#allocation4 + $0x170] sm:$0xff]
    %v379 = vld [vmem:[#allocation4 + $0x178] sm:$0xff]
    %s380 = scalar_lea.vmem [#allocation10], 1
    %v381 = vld [vmem:[%s380] ss:$8 sm:$0x3]
    %v383 = vperm.slane %v381, 0
    %v384 = vperm.slane %v381, 1
    %v435 = vunpack.c.l.b16 %v332
    %v436 = vunpack.c.h.b16 %v332
    %v437 = vunpack.c.l.b16 %v333
    %v438 = vunpack.c.h.b16 %v333
    %v439 = vunpack.c.l.b16 %v334
    %v440 = vunpack.c.h.b16 %v334
    %v441 = vunpack.c.l.b16 %v335
    %v442 = vunpack.c.h.b16 %v335
    %v443 = vunpack.c.l.b16 %v336
    %v444 = vunpack.c.h.b16 %v336
    %v445 = vunpack.c.l.b16 %v337
    %v446 = vunpack.c.h.b16 %v337
    %v447 = vunpack.c.l.b16 %v338
    %v448 = vunpack.c.h.b16 %v338
    %v449 = vunpack.c.l.b16 %v339
    %v450 = vunpack.c.h.b16 %v339
    %v451 = vunpack.c.l.b16 %v340
    %v452 = vunpack.c.h.b16 %v340
    %v453 = vunpack.c.l.b16 %v341
    %v454 = vunpack.c.h.b16 %v341
    %v455 = vunpack.c.l.b16 %v342
    %v456 = vunpack.c.h.b16 %v342
    %v457 = vunpack.c.l.b16 %v343
    %v458 = vunpack.c.h.b16 %v343
    %v459 = vunpack.c.l.b16 %v344
    %v460 = vunpack.c.h.b16 %v344
    %v461 = vunpack.c.l.b16 %v345
    %v462 = vunpack.c.h.b16 %v345
    %v463 = vunpack.c.l.b16 %v346
    %v464 = vunpack.c.h.b16 %v346
    %v465 = vunpack.c.l.b16 %v347
    %v466 = vunpack.c.h.b16 %v347
    %v467 = vunpack.c.l.b16 %v348
    %v468 = vunpack.c.h.b16 %v348
    %v469 = vunpack.c.l.b16 %v349
    %v470 = vunpack.c.h.b16 %v349
    %v471 = vunpack.c.l.b16 %v350
    %v472 = vunpack.c.h.b16 %v350
    %v473 = vunpack.c.l.b16 %v351
    %v474 = vunpack.c.h.b16 %v351
    %v475 = vunpack.c.l.b16 %v352
    %v476 = vunpack.c.h.b16 %v352
    %v477 = vunpack.c.l.b16 %v353
    %v478 = vunpack.c.h.b16 %v353
    %v479 = vunpack.c.l.b16 %v354
    %v480 = vunpack.c.h.b16 %v354
    %v481 = vunpack.c.l.b16 %v355
    %v482 = vunpack.c.h.b16 %v355
    %v483 = vunpack.c.l.b16 %v356
    %v484 = vunpack.c.h.b16 %v356
    %v485 = vunpack.c.l.b16 %v357
    %v486 = vunpack.c.h.b16 %v357
    %v487 = vunpack.c.l.b16 %v358
    %v488 = vunpack.c.h.b16 %v358
    %v489 = vunpack.c.l.b16 %v359
    %v490 = vunpack.c.h.b16 %v359
    %v491 = vunpack.c.l.b16 %v360
    %v492 = vunpack.c.h.b16 %v360
    %v493 = vunpack.c.l.b16 %v361
    %v494 = vunpack.c.h.b16 %v361
    %v495 = vunpack.c.l.b16 %v362
    %v496 = vunpack.c.h.b16 %v362
    %v497 = vunpack.c.l.b16 %v363
    %v498 = vunpack.c.h.b16 %v363
    %v499 = vunpack.c.l.b16 %v364
    %v500 = vunpack.c.h.b16 %v364
    %v501 = vunpack.c.l.b16 %v365
    %v502 = vunpack.c.h.b16 %v365
    %v503 = vunpack.c.l.b16 %v366
    %v504 = vunpack.c.h.b16 %v366
    %v505 = vunpack.c.l.b16 %v367
    %v506 = vunpack.c.h.b16 %v367
    %v507 = vunpack.c.l.b16 %v368
    %v508 = vunpack.c.h.b16 %v368
    %v509 = vunpack.c.l.b16 %v369
    %v510 = vunpack.c.h.b16 %v369
    %v511 = vunpack.c.l.b16 %v370
    %v512 = vunpack.c.h.b16 %v370
    %v513 = vunpack.c.l.b16 %v371
    %v514 = vunpack.c.h.b16 %v371
    %v515 = vunpack.c.l.b16 %v372
    %v516 = vunpack.c.h.b16 %v372
    %v517 = vunpack.c.l.b16 %v373
    %v518 = vunpack.c.h.b16 %v373
    %v519 = vunpack.c.l.b16 %v374
    %v520 = vunpack.c.h.b16 %v374
    %v521 = vunpack.c.l.b16 %v375
    %v522 = vunpack.c.h.b16 %v375
    %v523 = vunpack.c.l.b16 %v376
    %v524 = vunpack.c.h.b16 %v376
    %v525 = vunpack.c.l.b16 %v377
    %v526 = vunpack.c.h.b16 %v377
    %v527 = vunpack.c.l.b16 %v378
    %v528 = vunpack.c.h.b16 %v378
    %v529 = vunpack.c.l.b16 %v379
    %v530 = vunpack.c.h.b16 %v379
    %v531 = vpack.c.b16 %v437, %v435
    %v532 = vpack.c.b16 %v438, %v436
    %v533 = vpack.c.b16 %v441, %v439
    %v534 = vpack.c.b16 %v442, %v440
    %v535 = vpack.c.b16 %v445, %v443
    %v536 = vpack.c.b16 %v446, %v444
    %v537 = vpack.c.b16 %v449, %v447
    %v538 = vpack.c.b16 %v450, %v448
    %v539 = vpack.c.b16 %v453, %v451
    %v540 = vpack.c.b16 %v454, %v452
    %v541 = vpack.c.b16 %v457, %v455
    %v542 = vpack.c.b16 %v458, %v456
    %v543 = vpack.c.b16 %v461, %v459
    %v544 = vpack.c.b16 %v462, %v460
    %v545 = vpack.c.b16 %v465, %v463
    %v546 = vpack.c.b16 %v466, %v464
    %v547 = vpack.c.b16 %v469, %v467
    %v548 = vpack.c.b16 %v470, %v468
    %v549 = vpack.c.b16 %v473, %v471
    %v550 = vpack.c.b16 %v474, %v472
    %v551 = vpack.c.b16 %v477, %v475
    %v552 = vpack.c.b16 %v478, %v476
    %v553 = vpack.c.b16 %v481, %v479
    %v554 = vpack.c.b16 %v482, %v480
    %v555 = vpack.c.b16 %v485, %v483
    %v556 = vpack.c.b16 %v486, %v484
    %v557 = vpack.c.b16 %v489, %v487
    %v558 = vpack.c.b16 %v490, %v488
    %v559 = vpack.c.b16 %v493, %v491
    %v560 = vpack.c.b16 %v494, %v492
    %v561 = vpack.c.b16 %v497, %v495
    %v562 = vpack.c.b16 %v498, %v496
    %v563 = vpack.c.b16 %v501, %v499
    %v564 = vpack.c.b16 %v502, %v500
    %v565 = vpack.c.b16 %v505, %v503
    %v566 = vpack.c.b16 %v506, %v504
    %v567 = vpack.c.b16 %v509, %v507
    %v568 = vpack.c.b16 %v510, %v508
    %v569 = vpack.c.b16 %v513, %v511
    %v570 = vpack.c.b16 %v514, %v512
    %v571 = vpack.c.b16 %v517, %v515
    %v572 = vpack.c.b16 %v518, %v516
    %v573 = vpack.c.b16 %v521, %v519
    %v574 = vpack.c.b16 %v522, %v520
    %v575 = vpack.c.b16 %v525, %v523
    %v576 = vpack.c.b16 %v526, %v524
    %v577 = vpack.c.b16 %v529, %v527
    %v578 = vpack.c.b16 %v530, %v528
    %627 = vmatpush.bf16.msra.mxu0 %v545
    %628 = vmatpush.bf16.msra.mxu0 %v543
    %629 = vmatpush.bf16.msra.mxu0 %v541
    %630 = vmatpush.bf16.msra.mxu0 %v539
    %631 = vmatpush.bf16.msra.mxu0 %v537
    %632 = vmatpush.bf16.msra.mxu0 %v535
    %633 = vmatpush.bf16.msra.mxu0 %v533
    %634 = vmatpush.bf16.msra.mxu0 %v531
    %635 = vmatmul.bf16.gmra.mxu0 %v329
    %v636 = vpop.f32.mrf.mxu0
    %v637 = vadd.f32 %v383, %v636
    %v638 = vpop.f32.mrf.mxu0
    %639 = vdwg.mxu0
    %640 = vmatpush.bf16.msra.mxu0 %v561
    %641 = vmatpush.bf16.msra.mxu0 %v559
    %642 = vmatpush.bf16.msra.mxu0 %v557
    %643 = vmatpush.bf16.msra.mxu0 %v555
    %644 = vmatpush.bf16.msra.mxu0 %v553
    %645 = vmatpush.bf16.msra.mxu0 %v551
    %646 = vmatpush.bf16.msra.mxu0 %v549
    %647 = vmatpush.bf16.msra.mxu0 %v547
    %648 = vmatmul.bf16.gmra.mxu0 %v330
    %v649 = vpop.f32.mrf.mxu0
    %v650 = vadd.f32 %v637, %v649
    %v651 = vpop.f32.mrf.mxu0
    %652 = vdwg.mxu0
    %653 = vmatpush.bf16.msra.mxu0 %v577
    %654 = vmatpush.bf16.msra.mxu0 %v575
    %655 = vmatpush.bf16.msra.mxu0 %v573
    %656 = vmatpush.bf16.msra.mxu0 %v571
    %657 = vmatpush.bf16.msra.mxu0 %v569
    %658 = vmatpush.bf16.msra.mxu0 %v567
    %659 = vmatpush.bf16.msra.mxu0 %v565
    %660 = vmatpush.bf16.msra.mxu0 %v563
    %661 = vmatmul.bf16.gmra.mxu0 %v331
    %v662 = vpop.f32.mrf.mxu0
    %v663 = vadd.f32 %v650, %v662
    %v664 = vpop.f32.mrf.mxu0
    %665 = vdwg.mxu0
    %666 = vmatpush.bf16.msra.mxu0 %v546
    %667 = vmatpush.bf16.msra.mxu0 %v544
    %668 = vmatpush.bf16.msra.mxu0 %v542
    %669 = vmatpush.bf16.msra.mxu0 %v540
    %670 = vmatpush.bf16.msra.mxu0 %v538
    %671 = vmatpush.bf16.msra.mxu0 %v536
    %672 = vmatpush.bf16.msra.mxu0 %v534
    %673 = vmatpush.bf16.msra.mxu0 %v532
    %674 = vmatmul.bf16.gmra.mxu0 %v329
    %v675 = vpop.f32.mrf.mxu0
    %v676 = vadd.f32 %v384, %v675
    %v677 = vpop.f32.mrf.mxu0
    %678 = vdwg.mxu0
    %679 = vmatpush.bf16.msra.mxu0 %v562
    %680 = vmatpush.bf16.msra.mxu0 %v560
    %681 = vmatpush.bf16.msra.mxu0 %v558
    %682 = vmatpush.bf16.msra.mxu0 %v556
    %683 = vmatpush.bf16.msra.mxu0 %v554
    %684 = vmatpush.bf16.msra.mxu0 %v552
    %685 = vmatpush.bf16.msra.mxu0 %v550
    %686 = vmatpush.bf16.msra.mxu0 %v548
    %687 = vmatmul.bf16.gmra.mxu0 %v330
    %v688 = vpop.f32.mrf.mxu0
    %v689 = vadd.f32 %v676, %v688
    %v690 = vpop.f32.mrf.mxu0
    %691 = vdwg.mxu0
    %692 = vmatpush.bf16.msra.mxu0 %v578
    %693 = vmatpush.bf16.msra.mxu0 %v576
    %694 = vmatpush.bf16.msra.mxu0 %v574
    %695 = vmatpush.bf16.msra.mxu0 %v572
    %696 = vmatpush.bf16.msra.mxu0 %v570
    %697 = vmatpush.bf16.msra.mxu0 %v568
    %698 = vmatpush.bf16.msra.mxu0 %v566
    %699 = vmatpush.bf16.msra.mxu0 %v564
    %700 = vmatmul.bf16.gmra.mxu0 %v331
    %v701 = vpop.f32.mrf.mxu0
    %v702 = vadd.f32 %v689, %v701
    %v703 = vpop.f32.mrf.mxu0
    %704 = vdwg.mxu0
    %v705 = vtanh.pop %v663
    %v706 = vtanh.pop %v702
    %v707 = vpack.c.bf16 %v705, %v705
    %v708 = vpack.c.bf16 %v706, %v706
    %v709 = vld [vmem:[#allocation6] sm:$0xf]
    %v710 = vld [vmem:[#allocation6 + $0x4] sm:$0xf]
    %v711 = vld [vmem:[#allocation6 + $0x8] sm:$0xf]
    %v712 = vld [vmem:[#allocation6 + $0xc] sm:$0xf]
    %v713 = vld [vmem:[#allocation6 + $0x10] sm:$0xf]
    %v714 = vld [vmem:[#allocation6 + $0x14] sm:$0xf]
    %v715 = vld [vmem:[#allocation6 + $0x18] sm:$0xf]
    %v716 = vld [vmem:[#allocation6 + $0x1c] sm:$0xf]
    %v717 = vld [vmem:[#allocation6 + $0x20] sm:$0xf]
    %v718 = vld [vmem:[#allocation6 + $0x24] sm:$0xf]
    %v719 = vld [vmem:[#allocation6 + $0x28] sm:$0xf]
    %v720 = vld [vmem:[#allocation6 + $0x2c] sm:$0xf]
    %v721 = vld [vmem:[#allocation6 + $0x30] sm:$0xf]
    %v722 = vld [vmem:[#allocation6 + $0x34] sm:$0xf]
    %v723 = vld [vmem:[#allocation6 + $0x38] sm:$0xf]
    %v724 = vld [vmem:[#allocation6 + $0x3c] sm:$0xf]
    %v725 = vld [vmem:[#allocation6 + $0x40] sm:$0xf]
    %v726 = vld [vmem:[#allocation6 + $0x44] sm:$0xf]
    %v727 = vld [vmem:[#allocation6 + $0x48] sm:$0xf]
    %v728 = vld [vmem:[#allocation6 + $0x4c] sm:$0xf]
    %v729 = vld [vmem:[#allocation6 + $0x50] sm:$0xf]
    %v730 = vld [vmem:[#allocation6 + $0x54] sm:$0xf]
    %v731 = vld [vmem:[#allocation6 + $0x58] sm:$0xf]
    %v732 = vld [vmem:[#allocation6 + $0x5c] sm:$0xf]
    %v733 = vld [vmem:[#allocation6 + $0x60] sm:$0xf]
    %v734 = vld [vmem:[#allocation6 + $0x64] sm:$0xf]
    %v735 = vld [vmem:[#allocation6 + $0x68] sm:$0xf]
    %v736 = vld [vmem:[#allocation6 + $0x6c] sm:$0xf]
    %v737 = vld [vmem:[#allocation6 + $0x70] sm:$0xf]
    %v738 = vld [vmem:[#allocation6 + $0x74] sm:$0xf]
    %v739 = vld [vmem:[#allocation6 + $0x78] sm:$0xf]
    %v740 = vld [vmem:[#allocation6 + $0x7c] sm:$0xf]
    %v741 = vld [vmem:[#allocation10 + $0x2] ss:$0 sm:$0xff]
    %v774 = vunpack.c.l.b16 %v709
    %v775 = vunpack.c.l.b16 %v710
    %v776 = vunpack.c.l.b16 %v711
    %v777 = vunpack.c.l.b16 %v712
    %v778 = vunpack.c.l.b16 %v713
    %v779 = vunpack.c.l.b16 %v714
    %v780 = vunpack.c.l.b16 %v715
    %v781 = vunpack.c.l.b16 %v716
    %v782 = vunpack.c.l.b16 %v717
    %v783 = vunpack.c.l.b16 %v718
    %v784 = vunpack.c.l.b16 %v719
    %v785 = vunpack.c.l.b16 %v720
    %v786 = vunpack.c.l.b16 %v721
    %v787 = vunpack.c.l.b16 %v722
    %v788 = vunpack.c.l.b16 %v723
    %v789 = vunpack.c.l.b16 %v724
    %v790 = vunpack.c.l.b16 %v725
    %v791 = vunpack.c.l.b16 %v726
    %v792 = vunpack.c.l.b16 %v727
    %v793 = vunpack.c.l.b16 %v728
    %v794 = vunpack.c.l.b16 %v729
    %v795 = vunpack.c.l.b16 %v730
    %v796 = vunpack.c.l.b16 %v731
    %v797 = vunpack.c.l.b16 %v732
    %v798 = vunpack.c.l.b16 %v733
    %v799 = vunpack.c.l.b16 %v734
    %v800 = vunpack.c.l.b16 %v735
    %v801 = vunpack.c.l.b16 %v736
    %v802 = vunpack.c.l.b16 %v737
    %v803 = vunpack.c.l.b16 %v738
    %v804 = vunpack.c.l.b16 %v739
    %v805 = vunpack.c.l.b16 %v740
    %v806 = vpack.c.b16 %v775, %v774
    %v807 = vpack.c.b16 %v777, %v776
    %v808 = vpack.c.b16 %v779, %v778
    %v809 = vpack.c.b16 %v781, %v780
    %v810 = vpack.c.b16 %v783, %v782
    %v811 = vpack.c.b16 %v785, %v784
    %v812 = vpack.c.b16 %v787, %v786
    %v813 = vpack.c.b16 %v789, %v788
    %v814 = vpack.c.b16 %v791, %v790
    %v815 = vpack.c.b16 %v793, %v792
    %v816 = vpack.c.b16 %v795, %v794
    %v817 = vpack.c.b16 %v797, %v796
    %v818 = vpack.c.b16 %v799, %v798
    %v819 = vpack.c.b16 %v801, %v800
    %v820 = vpack.c.b16 %v803, %v802
    %v821 = vpack.c.b16 %v805, %v804
    %838 = vmatpush.bf16.msra.mxu0 %v813
    %839 = vmatpush.bf16.msra.mxu0 %v812
    %840 = vmatpush.bf16.msra.mxu0 %v811
    %841 = vmatpush.bf16.msra.mxu0 %v810
    %842 = vmatpush.bf16.msra.mxu0 %v809
    %843 = vmatpush.bf16.msra.mxu0 %v808
    %844 = vmatpush.bf16.msra.mxu0 %v807
    %845 = vmatpush.bf16.msra.mxu0 %v806
    %846 = vmatmul.bf16.gmra.mxu0 %v707
    %v847 = vpop.f32.mrf.mxu0
    %v848 = vadd.f32 %v741, %v847
    %v849 = vpop.f32.mrf.mxu0
    %850 = vdwg.mxu0
    %851 = vmatpush.bf16.msra.mxu0 %v821
    %852 = vmatpush.bf16.msra.mxu0 %v820
    %853 = vmatpush.bf16.msra.mxu0 %v819
    %854 = vmatpush.bf16.msra.mxu0 %v818
    %855 = vmatpush.bf16.msra.mxu0 %v817
    %856 = vmatpush.bf16.msra.mxu0 %v816
    %857 = vmatpush.bf16.msra.mxu0 %v815
    %858 = vmatpush.bf16.msra.mxu0 %v814
    %859 = vmatmul.bf16.gmra.mxu0 %v708
    %v860 = vpop.f32.mrf.mxu0
    %v861 = vadd.f32 %v848, %v860
    %v862 = vpop.f32.mrf.mxu0
    %863 = vdwg.mxu0
    %v864 = vtanh.pop %v861
    %v865 = vpack.c.bf16 %v864, %v864
    %v866 = vld [vmem:[#allocation7] sm:$0xf]
    %v867 = vld [vmem:[#allocation7 + $0x4] sm:$0xf]
    %v868 = vld [vmem:[#allocation7 + $0x8] sm:$0xf]
    %v869 = vld [vmem:[#allocation7 + $0xc] sm:$0xf]
    %v870 = vld [vmem:[#allocation7 + $0x10] sm:$0xf]
    %v871 = vld [vmem:[#allocation7 + $0x14] sm:$0xf]
    %v872 = vld [vmem:[#allocation7 + $0x18] sm:$0xf]
    %v873 = vld [vmem:[#allocation7 + $0x1c] sm:$0xf]
    %v874 = vld [vmem:[#allocation7 + $0x20] sm:$0xf]
    %v875 = vld [vmem:[#allocation7 + $0x24] sm:$0xf]
    %v876 = vld [vmem:[#allocation7 + $0x28] sm:$0xf]
    %v877 = vld [vmem:[#allocation7 + $0x2c] sm:$0xf]
    %v878 = vld [vmem:[#allocation7 + $0x30] sm:$0xf]
    %v879 = vld [vmem:[#allocation7 + $0x34] sm:$0xf]
    %v880 = vld [vmem:[#allocation7 + $0x38] sm:$0xf]
    %v881 = vld [vmem:[#allocation7 + $0x3c] sm:$0xf]
    %v882 = vld [vmem:[#allocation10 + $0x3] ss:$0 sm:$0xff]
    %v899 = vunpack.c.l.b16 %v866
    %v900 = vunpack.c.l.b16 %v867
    %v901 = vunpack.c.l.b16 %v868
    %v902 = vunpack.c.l.b16 %v869
    %v903 = vunpack.c.l.b16 %v870
    %v904 = vunpack.c.l.b16 %v871
    %v905 = vunpack.c.l.b16 %v872
    %v906 = vunpack.c.l.b16 %v873
    %v907 = vunpack.c.l.b16 %v874
    %v908 = vunpack.c.l.b16 %v875
    %v909 = vunpack.c.l.b16 %v876
    %v910 = vunpack.c.l.b16 %v877
    %v911 = vunpack.c.l.b16 %v878
    %v912 = vunpack.c.l.b16 %v879
    %v913 = vunpack.c.l.b16 %v880
    %v914 = vunpack.c.l.b16 %v881
    %v915 = vpack.c.b16 %v900, %v899
    %v916 = vpack.c.b16 %v902, %v901
    %v917 = vpack.c.b16 %v904, %v903
    %v918 = vpack.c.b16 %v906, %v905
    %v919 = vpack.c.b16 %v908, %v907
    %v920 = vpack.c.b16 %v910, %v909
    %v921 = vpack.c.b16 %v912, %v911
    %v922 = vpack.c.b16 %v914, %v913
    %931 = vmatpush.bf16.msra.mxu0 %v922
    %932 = vmatpush.bf16.msra.mxu0 %v921
    %933 = vmatpush.bf16.msra.mxu0 %v920
    %934 = vmatpush.bf16.msra.mxu0 %v919
    %935 = vmatpush.bf16.msra.mxu0 %v918
    %936 = vmatpush.bf16.msra.mxu0 %v917
    %937 = vmatpush.bf16.msra.mxu0 %v916
    %938 = vmatpush.bf16.msra.mxu0 %v915
    %939 = vmatmul.bf16.gmra.mxu0 %v865
    %v940 = vpop.f32.mrf.mxu0
    %v941 = vadd.f32 %v882, %v940
    %v942 = vpop.f32.mrf.mxu0
    %943 = vdwg.mxu0
    %v944 = vtanh.pop %v941
    %v945 = vpack.c.bf16 %v944, %v944
    %v946 = vld [vmem:[#allocation9] sm:$0xf]
    %v947 = vld [vmem:[#allocation9 + $0x4] sm:$0xf]
    %v948 = vld [vmem:[#allocation9 + $0x8] sm:$0xf]
    %v949 = vld [vmem:[#allocation9 + $0xc] sm:$0xf]
    %v950 = vld [vmem:[#allocation9 + $0x10] sm:$0xf]
    %v951 = vld [vmem:[#allocation9 + $0x14] sm:$0xf]
    %v952 = vld [vmem:[#allocation9 + $0x18] sm:$0xf]
    %v953 = vld [vmem:[#allocation9 + $0x1c] sm:$0xf]
    %v954 = vld [vmem:[#allocation9 + $0x20] sm:$0xf]
    %v955 = vld [vmem:[#allocation9 + $0x24] sm:$0xf]
    %v956 = vld [vmem:[#allocation9 + $0x28] sm:$0xf]
    %v957 = vld [vmem:[#allocation9 + $0x2c] sm:$0xf]
    %v958 = vld [vmem:[#allocation9 + $0x30] sm:$0xf]
    %v959 = vld [vmem:[#allocation9 + $0x34] sm:$0xf]
    %v960 = vld [vmem:[#allocation9 + $0x38] sm:$0xf]
    %v961 = vld [vmem:[#allocation9 + $0x3c] sm:$0xf]
    %v962 = vld [vmem:[#allocation10 + $0x4] ss:$0 sm:$0xff]
    %v979 = vunpack.c.l.b16 %v946
    %v980 = vunpack.c.l.b16 %v947
    %v981 = vunpack.c.l.b16 %v948
    %v982 = vunpack.c.l.b16 %v949
    %v983 = vunpack.c.l.b16 %v950
    %v984 = vunpack.c.l.b16 %v951
    %v985 = vunpack.c.l.b16 %v952
    %v986 = vunpack.c.l.b16 %v953
    %v987 = vunpack.c.l.b16 %v954
    %v988 = vunpack.c.l.b16 %v955
    %v989 = vunpack.c.l.b16 %v956
    %v990 = vunpack.c.l.b16 %v957
    %v991 = vunpack.c.l.b16 %v958
    %v992 = vunpack.c.l.b16 %v959
    %v993 = vunpack.c.l.b16 %v960
    %v994 = vunpack.c.l.b16 %v961
    %v995 = vpack.c.b16 %v980, %v979
    %v996 = vpack.c.b16 %v982, %v981
    %v997 = vpack.c.b16 %v984, %v983
    %v998 = vpack.c.b16 %v986, %v985
    %v999 = vpack.c.b16 %v988, %v987
    %v1000 = vpack.c.b16 %v990, %v989
    %v1001 = vpack.c.b16 %v992, %v991
    %v1002 = vpack.c.b16 %v994, %v993
    %1011 = vmatpush.bf16.msra.mxu0 %v1002
    %1012 = vmatpush.bf16.msra.mxu0 %v1001
    %1013 = vmatpush.bf16.msra.mxu0 %v1000
    %1014 = vmatpush.bf16.msra.mxu0 %v999
    %1015 = vmatpush.bf16.msra.mxu0 %v998
    %1016 = vmatpush.bf16.msra.mxu0 %v997
    %1017 = vmatpush.bf16.msra.mxu0 %v996
    %1018 = vmatpush.bf16.msra.mxu0 %v995
    %1019 = vmatmul.bf16.gmra.mxu0 %v945
    %v1020 = vpop.f32.mrf.mxu0
    %v1021 = vadd.f32 %v962, %v1020
    %v1022 = vpop.f32.mrf.mxu0
    %1023 = vdwg.mxu0
    %v1024 = vtanh.pop %v1021
    %v1025 = vmul.f32 %v1024, 2.0
    %1026 = vst [vmem:[%s7] sm:$0xff] %v1025
    // Predicated region
    $region54: #{actor_forward.1} parent=1 // pred_check
      _
    $region55: #{actor_forward.1} parent=1 // pred_check_branch
      %1028 = sbr.rel (0) target = $region57
    $region56: #{actor_forward.1} parent=1 // pred_region
      _
    $region57: #{actor_forward.1} parent=1 // pred_fallthru
      _
    // Predicated region
    $region58: #{actor_forward.1} parent=1 // pred_check
      _
    $region59: #{actor_forward.1} parent=1 // pred_check_branch
      %1030 = sbr.rel (0) target = $region61
    $region60: #{actor_forward.1} parent=1 // pred_region
      _
    $region61: #{actor_forward.1} parent=1 // pred_fallthru
      _
    %1031 = vsyncpa [#allocation3], 1
    %1032 = vsyncpa [#allocation5], 1
    %1033 = vsyncpa [#allocation8], 1
    %1034 = vsyncpa [#allocation11], 1

</llo_original>
